<compile_context>
chip_gen: v5e
topology: v5e:2x2
jax: 0.10.0
libtpu: 0.0.40
codegen_flags: <defaults>
</compile_context>

<pallas_src>
import functools

import jax
import jax.numpy as jnp
import numpy as np
from jax.experimental import pallas as pl
from jax.experimental.pallas import tpu as pltpu


def _conv_attn_kernel(masks_ref, q_ref, k_ref, v_ref, o_ref, logit_scr,
                      *, ks, W, HWp):
    """One batch per grid step, spatially flattened (lane-dense) layout.

    masks_ref : (P, HWp)     float {0,1}; masks[p, n]==1 iff window tap p of
                             output position n lands inside the image (P=ks*ks)
    q_ref     : (C, HWp)     queries        (batch dim squeezed by BlockSpec)
    k_ref     : (C, HWp)     keys   (un-padded; borders handled via masks)
    v_ref     : (C, HWp)     values (un-padded)
    o_ref     : (C, HWp)     output
    logit_scr : (P_pad, HWp) f32 scratch holding the per-tap logits
    """
    lo = (ks - 1) // 2
    hi = ks // 2
    dis = list(range(-lo, hi + 1))
    djs = list(range(-lo, hi + 1))
    P = ks * ks

    def rollL(x, s):
        # rollL(x, s)[..., n] == x[..., (n - s) mod HWp]   (lane rotate on XLU)
        s = s % HWp
        return x if s == 0 else pltpu.roll(x, shift=s, axis=1)

    def csum(x):
        # (C, HWp) -> (1, HWp) channel sum, f32 accumulation.  For C a multiple
        # of 8 (>8) pre-accumulate the C//8 groups on the VALU so only a single
        # 8->1 cross-sublane reduce hits the XLU.
        c = x.shape[0]
        xf = x.astype(jnp.float32)
        if c > 8 and c % 8 == 0:
            xf = xf.reshape(c // 8, 8, xf.shape[1]).sum(axis=0)
        return jnp.sum(xf, axis=0, keepdims=True)

    q = q_ref[...]
    k = k_ref[...]
    v = v_ref[...]

    # Hoist the tap-validity masks once; reused by both passes.
    valid = [masks_ref[pl.ds(p, 1), :] != 0.0 for p in range(P)]   # (1,HWp) bool

    # ---- pass 1: per-tap logits into scratch + running max -----------------
    # Column (dj) shifts applied to q once; row (di) shifts applied to k once;
    # the per-tap alignment is a cheap (1, HWp) roll of the partial logit.
    q_dj = {dj: rollL(q, dj) for dj in djs}            # ks-1 big XLU rolls
    m_run = None
    for di in dis:
        k_di = rollL(k, -di * W)                       # one big roll per di!=0
        for dj in djs:
            p = (di + lo) * ks + (dj + lo)
            part = csum(q_dj[dj] * k_di)               # (1, HWp) f32
            logit = rollL(part, -dj)                   # small (1, HWp) roll
            if not (di == 0 and dj == 0):
                # out-of-image taps contribute logit exactly 0 (zero padding);
                # jnp.where keeps this NaN-safe even for +/-inf logits.
                logit = jnp.where(valid[p], logit, 0.0)
            logit_scr[pl.ds(p, 1), :] = logit
            m_run = logit if m_run is None else jnp.maximum(m_run, logit)

    # ---- pass 2 (fused): exp + denominator + un-normalised value sum -------
    v_di = {di: rollL(v, -di * W) for di in dis}       # ks-1 big XLU rolls
    denom = None
    out_acc = None
    for dj in djs:
        t_dj = None
        for di in dis:
            p = (di + lo) * ks + (dj + lo)
            e = jnp.exp(logit_scr[pl.ds(p, 1), :] - m_run)     # (1, HWp) f32
            denom = e if denom is None else denom + e
            if di == 0 and dj == 0:
                wgt = e                                # centre tap always valid
            else:
                wgt = jnp.where(valid[p], e, 0.0)      # OOB values contribute 0
            contrib = rollL(wgt, dj) * v_di[di]        # (C, HWp), f32 acc
            t_dj = contrib if t_dj is None else t_dj + contrib
        t_dj = rollL(t_dj, -dj)                        # one big roll per dj!=0
        out_acc = t_dj if out_acc is None else out_acc + t_dj

    # Approx reciprocal on the EUP slot; one Newton step on a (1, HWp) tile
    # keeps the result well inside the 1e-4 test tolerance.
    inv = pl.reciprocal(denom, approx=True)
    inv = inv * (2.0 - denom * inv)
    o_ref[...] = (out_acc * inv).astype(o_ref.dtype)


def _border_masks(ks, H, W):
    """(ks*ks, H*W) float32 {0,1}: tap validity under zero 'same' padding."""
    lo = (ks - 1) // 2
    rows = np.arange(H)[:, None]
    cols = np.arange(W)[None, :]
    out = []
    for di in range(ks):
        for dj in range(ks):
            ddi, ddj = di - lo, dj - lo
            valid = ((rows + ddi >= 0) & (rows + ddi < H)
                     & (cols + ddj >= 0) & (cols + ddj < W))
            out.append(valid.reshape(-1))
    return np.stack(out).astype(np.float32)


def conv_attention_layer(q, k, v, kernel_size=3):
    """q, k, v : (B, C, H, W)  ->  (B, C, H, W).  stride=1, zeros padding."""
    B, C, H, W = q.shape
    assert k.shape == q.shape and v.shape == q.shape
    ks = kernel_size
    P = ks * ks
    P_pad = ((P + 7) // 8) * 8
    HW = H * W
    HWp = ((HW + 127) // 128) * 128       # lane-dense: pad spatial to 128 mult

    # Lane-dense layout: spatial flattened onto the 128-lane axis.  No padded
    # K/V copies in HBM; zero-pad semantics come from the tiny border masks.
    qf = q.reshape(B, C, HW)
    kf = k.reshape(B, C, HW)
    vf = v.reshape(B, C, HW)
    masks_np = _border_masks(ks, H, W)
    if HWp != HW:
        pad = ((0, 0), (0, 0), (0, HWp - HW))
        qf = jnp.pad(qf, pad)
        kf = jnp.pad(kf, pad)
        vf = jnp.pad(vf, pad)
        masks_np = np.pad(masks_np, ((0, 0), (0, HWp - HW)))
    masks = jnp.asarray(masks_np, dtype=jnp.float32)

    kernel = functools.partial(_conv_attn_kernel, ks=ks, W=W, HWp=HWp)

    # VMEM limit derived from actual block sizes (+headroom) instead of a
    # hard-coded 64 MiB (which leaves zero slack on v7x's 64 MiB physical VMEM).
    itemsize = np.dtype(q.dtype).itemsize
    slab = C * HWp * itemsize
    vmem_needed = (2 * 4 * slab            # double-buffered q/k/v/out blocks
                   + 2 * P * HWp * 4       # masks (constant block)
                   + P_pad * HWp * 4       # logits scratch
                   + (12 << 20))           # compiler scratch / spill headroom
    vmem_limit = int(min(max(vmem_needed, 32 << 20), 128 << 20))

    out = pl.pallas_call(
        kernel,
        out_shape=jax.ShapeDtypeStruct((B, C, HWp), q.dtype),
        grid_spec=pltpu.PrefetchScalarGridSpec(
            num_scalar_prefetch=0,
            grid=(B,),
            in_specs=[
                # constant block index -> DMA'd once, stays resident in VMEM
                pl.BlockSpec((P, HWp), lambda b: (0, 0)),
                pl.BlockSpec((None, C, HWp), lambda b: (b, 0, 0)),
                pl.BlockSpec((None, C, HWp), lambda b: (b, 0, 0)),
                pl.BlockSpec((None, C, HWp), lambda b: (b, 0, 0)),
            ],
            out_specs=pl.BlockSpec((None, C, HWp), lambda b: (b, 0, 0)),
            scratch_shapes=[pltpu.VMEM((P_pad, HWp), jnp.float32)],
        ),
        compiler_params=pltpu.CompilerParams(
            dimension_semantics=("parallel",),
            vmem_limit_bytes=vmem_limit,
        ),
    )(masks, qf, kf, vf)

    if HWp != HW:
        out = out[:, :, :HW]
    return out.reshape(B, C, H, W)


def _reference(q, k, v, kernel_size=3):
    """Pure-JAX reference mirroring the torch module (stride=1, zeros pad)."""
    B, C, H, W = q.shape
    ks = kernel_size
    lo, hi = (ks - 1) // 2, ks // 2
    pad = ((0, 0), (0, 0), (lo, hi), (lo, hi))
    kp = jnp.pad(k, pad)
    vp = jnp.pad(v, pad)
    offsets = [(di, dj) for di in range(ks) for dj in range(ks)]
    logits = jnp.stack(
        [jnp.sum(q * kp[:, :, di:di + H, dj:dj + W], axis=1)
         for (di, dj) in offsets], axis=-1)              # (B, H, W, P)
    w = jax.nn.softmax(logits, axis=-1)
    out = jnp.zeros_like(q)
    for p, (di, dj) in enumerate(offsets):
        out = out + w[:, None, :, :, p] * vp[:, :, di:di + H, dj:dj + W]
    return out


if __name__ == "__main__":
    key = jax.random.PRNGKey(0)
    kq, kk, kv = jax.random.split(key, 3)
    B, C, H, W = 2, 4, 16, 16
    q = jax.random.normal(kq, (B, C, H, W), dtype=jnp.float32)
    k = jax.random.normal(kk, (B, C, H, W), dtype=jnp.float32)
    v = jax.random.normal(kv, (B, C, H, W), dtype=jnp.float32)

    out = conv_attention_layer(q, k, v, kernel_size=3)
    out = jax.block_until_ready(out)

    ref = _reference(q, k, v, kernel_size=3)
    assert out.shape == (B, C, H, W)
    np.testing.assert_allclose(np.asarray(out), np.asarray(ref),
                               rtol=1e-4, atol=1e-4)
    print("KERNEL_OK")
</pallas_src>

<mosaic_0001>
module attributes {stable_mosaic.version = 11 : i64} {
  func.func @_conv_attn_kernel(%arg0: i32, %arg1: memref<9x256xf32, #tpu.memory_space<vmem>>, %arg2: memref<1x4x256xf32, #tpu.memory_space<vmem>>, %arg3: memref<1x4x256xf32, #tpu.memory_space<vmem>>, %arg4: memref<1x4x256xf32, #tpu.memory_space<vmem>>, %arg5: memref<1x4x256xf32, #tpu.memory_space<vmem>>, %arg6: memref<16x256xf32, #tpu.memory_space<vmem>>) attributes {dimension_semantics = [#tpu.dimension_semantics<parallel>], iteration_bounds = array<i64: 2>, scalar_prefetch = 0 : i64, scratch_operands = 1 : i64, tpu.core_type = #tpu.core_type<tc>, window_params = [{pipeline_mode = #tpu.pipeline_mode<synchronous>, transform_indices = @transform_0, window_bounds = array<i64: 9, 256>}, {transform_indices = @transform_1, window_bounds = array<i64: 1, 4, 256>}, {transform_indices = @transform_2, window_bounds = array<i64: 1, 4, 256>}, {transform_indices = @transform_3, window_bounds = array<i64: 1, 4, 256>}, {transform_indices = @transform_4, window_bounds = array<i64: 1, 4, 256>}]} {
    %c0 = arith.constant 0 : index
    %c0_0 = arith.constant 0 : index
    %c0_1 = arith.constant 0 : index
    %0 = vector.load %arg2[%c0, %c0_0, %c0_1] : memref<1x4x256xf32, #tpu.memory_space<vmem>>, vector<1x4x256xf32>
    %1 = vector.shape_cast %0 : vector<1x4x256xf32> to vector<4x256xf32>
    %c0_2 = arith.constant 0 : index
    %c0_3 = arith.constant 0 : index
    %c0_4 = arith.constant 0 : index
    %2 = vector.load %arg3[%c0_2, %c0_3, %c0_4] : memref<1x4x256xf32, #tpu.memory_space<vmem>>, vector<1x4x256xf32>
    %3 = vector.shape_cast %2 : vector<1x4x256xf32> to vector<4x256xf32>
    %c0_5 = arith.constant 0 : index
    %c0_6 = arith.constant 0 : index
    %c0_7 = arith.constant 0 : index
    %4 = vector.load %arg4[%c0_5, %c0_6, %c0_7] : memref<1x4x256xf32, #tpu.memory_space<vmem>>, vector<1x4x256xf32>
    %5 = vector.shape_cast %4 : vector<1x4x256xf32> to vector<4x256xf32>
    %c0_8 = arith.constant 0 : index
    %c0_9 = arith.constant 0 : index
    %6 = vector.load %arg1[%c0_8, %c0_9] : memref<9x256xf32, #tpu.memory_space<vmem>>, vector<1x256xf32>
    %cst = arith.constant 0.000000e+00 : f32
    %7 = vector.broadcast %cst : f32 to vector<1x256xf32>
    %8 = arith.cmpf one, %6, %7 : vector<1x256xf32>
    %c1 = arith.constant 1 : index
    %c0_10 = arith.constant 0 : index
    %9 = vector.load %arg1[%c1, %c0_10] : memref<9x256xf32, #tpu.memory_space<vmem>>, vector<1x256xf32>
    %cst_11 = arith.constant 0.000000e+00 : f32
    %10 = vector.broadcast %cst_11 : f32 to vector<1x256xf32>
    %11 = arith.cmpf one, %9, %10 : vector<1x256xf32>
    %c2 = arith.constant 2 : index
    %c0_12 = arith.constant 0 : index
    %12 = vector.load %arg1[%c2, %c0_12] : memref<9x256xf32, #tpu.memory_space<vmem>>, vector<1x256xf32>
    %cst_13 = arith.constant 0.000000e+00 : f32
    %13 = vector.broadcast %cst_13 : f32 to vector<1x256xf32>
    %14 = arith.cmpf one, %12, %13 : vector<1x256xf32>
    %c3 = arith.constant 3 : index
    %c0_14 = arith.constant 0 : index
    %15 = vector.load %arg1[%c3, %c0_14] : memref<9x256xf32, #tpu.memory_space<vmem>>, vector<1x256xf32>
    %cst_15 = arith.constant 0.000000e+00 : f32
    %16 = vector.broadcast %cst_15 : f32 to vector<1x256xf32>
    %17 = arith.cmpf one, %15, %16 : vector<1x256xf32>
    %c5 = arith.constant 5 : index
    %c0_16 = arith.constant 0 : index
    %18 = vector.load %arg1[%c5, %c0_16] : memref<9x256xf32, #tpu.memory_space<vmem>>, vector<1x256xf32>
    %cst_17 = arith.constant 0.000000e+00 : f32
    %19 = vector.broadcast %cst_17 : f32 to vector<1x256xf32>
    %20 = arith.cmpf one, %18, %19 : vector<1x256xf32>
    %c6 = arith.constant 6 : index
    %c0_18 = arith.constant 0 : index
    %21 = vector.load %arg1[%c6, %c0_18] : memref<9x256xf32, #tpu.memory_space<vmem>>, vector<1x256xf32>
    %cst_19 = arith.constant 0.000000e+00 : f32
    %22 = vector.broadcast %cst_19 : f32 to vector<1x256xf32>
    %23 = arith.cmpf one, %21, %22 : vector<1x256xf32>
    %c7 = arith.constant 7 : index
    %c0_20 = arith.constant 0 : index
    %24 = vector.load %arg1[%c7, %c0_20] : memref<9x256xf32, #tpu.memory_space<vmem>>, vector<1x256xf32>
    %cst_21 = arith.constant 0.000000e+00 : f32
    %25 = vector.broadcast %cst_21 : f32 to vector<1x256xf32>
    %26 = arith.cmpf one, %24, %25 : vector<1x256xf32>
    %c8 = arith.constant 8 : index
    %c0_22 = arith.constant 0 : index
    %27 = vector.load %arg1[%c8, %c0_22] : memref<9x256xf32, #tpu.memory_space<vmem>>, vector<1x256xf32>
    %cst_23 = arith.constant 0.000000e+00 : f32
    %28 = vector.broadcast %cst_23 : f32 to vector<1x256xf32>
    %29 = arith.cmpf one, %27, %28 : vector<1x256xf32>
    %c255_i32 = arith.constant 255 : i32
    %30 = tpu.dynamic_rotate %1 by %c255_i32 dim 1 : vector<4x256xf32>, i32 -> vector<4x256xf32>
    %c1_i32 = arith.constant 1 : i32
    %31 = tpu.dynamic_rotate %1 by %c1_i32 dim 1 : vector<4x256xf32>, i32 -> vector<4x256xf32>
    %c16_i32 = arith.constant 16 : i32
    %32 = tpu.dynamic_rotate %3 by %c16_i32 dim 1 : vector<4x256xf32>, i32 -> vector<4x256xf32>
    %33 = arith.mulf %30, %32 : vector<4x256xf32>
    %cst_24 = arith.constant dense<0.000000e+00> : vector<256xf32>
    %34 = vector.multi_reduction <add>, %33, %cst_24 [0] : vector<4x256xf32> to vector<256xf32>
    %35 = vector.shape_cast %34 : vector<256xf32> to vector<1x256xf32>
    %c1_i32_25 = arith.constant 1 : i32
    %36 = tpu.dynamic_rotate %35 by %c1_i32_25 dim 1 : vector<1x256xf32>, i32 -> vector<1x256xf32>
    %cst_26 = arith.constant 0.000000e+00 : f32
    %37 = vector.broadcast %cst_26 : f32 to vector<1x256xf32>
    %38 = arith.select %8, %36, %37 : vector<1x256xi1>, vector<1x256xf32>
    %c0_27 = arith.constant 0 : index
    %c0_28 = arith.constant 0 : index
    %39 = vector.load %arg6[%c0_27, %c0_28] : memref<16x256xf32, #tpu.memory_space<vmem>>, vector<1x256xf32>
    tpu.vector_store %arg6[%c0_27, %c0_28], %38 {strides = array<i32>} : memref<16x256xf32, #tpu.memory_space<vmem>>, vector<1x256xf32>,
    %40 = arith.mulf %1, %32 : vector<4x256xf32>
    %cst_29 = arith.constant dense<0.000000e+00> : vector<256xf32>
    %41 = vector.multi_reduction <add>, %40, %cst_29 [0] : vector<4x256xf32> to vector<256xf32>
    %42 = vector.shape_cast %41 : vector<256xf32> to vector<1x256xf32>
    %cst_30 = arith.constant 0.000000e+00 : f32
    %43 = vector.broadcast %cst_30 : f32 to vector<1x256xf32>
    %44 = arith.select %11, %42, %43 : vector<1x256xi1>, vector<1x256xf32>
    %c1_31 = arith.constant 1 : index
    %c0_32 = arith.constant 0 : index
    %45 = vector.load %arg6[%c1_31, %c0_32] : memref<16x256xf32, #tpu.memory_space<vmem>>, vector<1x256xf32>
    tpu.vector_store %arg6[%c1_31, %c0_32], %44 {strides = array<i32>} : memref<16x256xf32, #tpu.memory_space<vmem>>, vector<1x256xf32>,
    %46 = arith.maximumf %38, %44 : vector<1x256xf32>
    %47 = arith.mulf %31, %32 : vector<4x256xf32>
    %cst_33 = arith.constant dense<0.000000e+00> : vector<256xf32>
    %48 = vector.multi_reduction <add>, %47, %cst_33 [0] : vector<4x256xf32> to vector<256xf32>
    %49 = vector.shape_cast %48 : vector<256xf32> to vector<1x256xf32>
    %c255_i32_34 = arith.constant 255 : i32
    %50 = tpu.dynamic_rotate %49 by %c255_i32_34 dim 1 : vector<1x256xf32>, i32 -> vector<1x256xf32>
    %cst_35 = arith.constant 0.000000e+00 : f32
    %51 = vector.broadcast %cst_35 : f32 to vector<1x256xf32>
    %52 = arith.select %14, %50, %51 : vector<1x256xi1>, vector<1x256xf32>
    %c2_36 = arith.constant 2 : index
    %c0_37 = arith.constant 0 : index
    %53 = vector.load %arg6[%c2_36, %c0_37] : memref<16x256xf32, #tpu.memory_space<vmem>>, vector<1x256xf32>
    tpu.vector_store %arg6[%c2_36, %c0_37], %52 {strides = array<i32>} : memref<16x256xf32, #tpu.memory_space<vmem>>, vector<1x256xf32>,
    %54 = arith.maximumf %46, %52 : vector<1x256xf32>
    %55 = arith.mulf %30, %3 : vector<4x256xf32>
    %cst_38 = arith.constant dense<0.000000e+00> : vector<256xf32>
    %56 = vector.multi_reduction <add>, %55, %cst_38 [0] : vector<4x256xf32> to vector<256xf32>
    %57 = vector.shape_cast %56 : vector<256xf32> to vector<1x256xf32>
    %c1_i32_39 = arith.constant 1 : i32
    %58 = tpu.dynamic_rotate %57 by %c1_i32_39 dim 1 : vector<1x256xf32>, i32 -> vector<1x256xf32>
    %cst_40 = arith.constant 0.000000e+00 : f32
    %59 = vector.broadcast %cst_40 : f32 to vector<1x256xf32>
    %60 = arith.select %17, %58, %59 : vector<1x256xi1>, vector<1x256xf32>
    %c3_41 = arith.constant 3 : index
    %c0_42 = arith.constant 0 : index
    %61 = vector.load %arg6[%c3_41, %c0_42] : memref<16x256xf32, #tpu.memory_space<vmem>>, vector<1x256xf32>
    tpu.vector_store %arg6[%c3_41, %c0_42], %60 {strides = array<i32>} : memref<16x256xf32, #tpu.memory_space<vmem>>, vector<1x256xf32>,
    %62 = arith.maximumf %54, %60 : vector<1x256xf32>
    %63 = arith.mulf %1, %3 : vector<4x256xf32>
    %cst_43 = arith.constant dense<0.000000e+00> : vector<256xf32>
    %64 = vector.multi_reduction <add>, %63, %cst_43 [0] : vector<4x256xf32> to vector<256xf32>
    %65 = vector.shape_cast %64 : vector<256xf32> to vector<1x256xf32>
    %c4 = arith.constant 4 : index
    %c0_44 = arith.constant 0 : index
    %66 = vector.load %arg6[%c4, %c0_44] : memref<16x256xf32, #tpu.memory_space<vmem>>, vector<1x256xf32>
    tpu.vector_store %arg6[%c4, %c0_44], %65 {strides = array<i32>} : memref<16x256xf32, #tpu.memory_space<vmem>>, vector<1x256xf32>,
    %67 = arith.maximumf %62, %65 : vector<1x256xf32>
    %68 = arith.mulf %31, %3 : vector<4x256xf32>
    %cst_45 = arith.constant dense<0.000000e+00> : vector<256xf32>
    %69 = vector.multi_reduction <add>, %68, %cst_45 [0] : vector<4x256xf32> to vector<256xf32>
    %70 = vector.shape_cast %69 : vector<256xf32> to vector<1x256xf32>
    %c255_i32_46 = arith.constant 255 : i32
    %71 = tpu.dynamic_rotate %70 by %c255_i32_46 dim 1 : vector<1x256xf32>, i32 -> vector<1x256xf32>
    %cst_47 = arith.constant 0.000000e+00 : f32
    %72 = vector.broadcast %cst_47 : f32 to vector<1x256xf32>
    %73 = arith.select %20, %71, %72 : vector<1x256xi1>, vector<1x256xf32>
    %c5_48 = arith.constant 5 : index
    %c0_49 = arith.constant 0 : index
    %74 = vector.load %arg6[%c5_48, %c0_49] : memref<16x256xf32, #tpu.memory_space<vmem>>, vector<1x256xf32>
    tpu.vector_store %arg6[%c5_48, %c0_49], %73 {strides = array<i32>} : memref<16x256xf32, #tpu.memory_space<vmem>>, vector<1x256xf32>,
    %75 = arith.maximumf %67, %73 : vector<1x256xf32>
    %c240_i32 = arith.constant 240 : i32
    %76 = tpu.dynamic_rotate %3 by %c240_i32 dim 1 : vector<4x256xf32>, i32 -> vector<4x256xf32>
    %77 = arith.mulf %30, %76 : vector<4x256xf32>
    %cst_50 = arith.constant dense<0.000000e+00> : vector<256xf32>
    %78 = vector.multi_reduction <add>, %77, %cst_50 [0] : vector<4x256xf32> to vector<256xf32>
    %79 = vector.shape_cast %78 : vector<256xf32> to vector<1x256xf32>
    %c1_i32_51 = arith.constant 1 : i32
    %80 = tpu.dynamic_rotate %79 by %c1_i32_51 dim 1 : vector<1x256xf32>, i32 -> vector<1x256xf32>
    %cst_52 = arith.constant 0.000000e+00 : f32
    %81 = vector.broadcast %cst_52 : f32 to vector<1x256xf32>
    %82 = arith.select %23, %80, %81 : vector<1x256xi1>, vector<1x256xf32>
    %c6_53 = arith.constant 6 : index
    %c0_54 = arith.constant 0 : index
    %83 = vector.load %arg6[%c6_53, %c0_54] : memref<16x256xf32, #tpu.memory_space<vmem>>, vector<1x256xf32>
    tpu.vector_store %arg6[%c6_53, %c0_54], %82 {strides = array<i32>} : memref<16x256xf32, #tpu.memory_space<vmem>>, vector<1x256xf32>,
    %84 = arith.maximumf %75, %82 : vector<1x256xf32>
    %85 = arith.mulf %1, %76 : vector<4x256xf32>
    %cst_55 = arith.constant dense<0.000000e+00> : vector<256xf32>
    %86 = vector.multi_reduction <add>, %85, %cst_55 [0] : vector<4x256xf32> to vector<256xf32>
    %87 = vector.shape_cast %86 : vector<256xf32> to vector<1x256xf32>
    %cst_56 = arith.constant 0.000000e+00 : f32
    %88 = vector.broadcast %cst_56 : f32 to vector<1x256xf32>
    %89 = arith.select %26, %87, %88 : vector<1x256xi1>, vector<1x256xf32>
    %c7_57 = arith.constant 7 : index
    %c0_58 = arith.constant 0 : index
    %90 = vector.load %arg6[%c7_57, %c0_58] : memref<16x256xf32, #tpu.memory_space<vmem>>, vector<1x256xf32>
    tpu.vector_store %arg6[%c7_57, %c0_58], %89 {strides = array<i32>} : memref<16x256xf32, #tpu.memory_space<vmem>>, vector<1x256xf32>,
    %91 = arith.maximumf %84, %89 : vector<1x256xf32>
    %92 = arith.mulf %31, %76 : vector<4x256xf32>
    %cst_59 = arith.constant dense<0.000000e+00> : vector<256xf32>
    %93 = vector.multi_reduction <add>, %92, %cst_59 [0] : vector<4x256xf32> to vector<256xf32>
    %94 = vector.shape_cast %93 : vector<256xf32> to vector<1x256xf32>
    %c255_i32_60 = arith.constant 255 : i32
    %95 = tpu.dynamic_rotate %94 by %c255_i32_60 dim 1 : vector<1x256xf32>, i32 -> vector<1x256xf32>
    %cst_61 = arith.constant 0.000000e+00 : f32
    %96 = vector.broadcast %cst_61 : f32 to vector<1x256xf32>
    %97 = arith.select %29, %95, %96 : vector<1x256xi1>, vector<1x256xf32>
    %c8_62 = arith.constant 8 : index
    %c0_63 = arith.constant 0 : index
    %98 = vector.load %arg6[%c8_62, %c0_63] : memref<16x256xf32, #tpu.memory_space<vmem>>, vector<1x256xf32>
    tpu.vector_store %arg6[%c8_62, %c0_63], %97 {strides = array<i32>} : memref<16x256xf32, #tpu.memory_space<vmem>>, vector<1x256xf32>,
    %99 = arith.maximumf %91, %97 : vector<1x256xf32>
    %c16_i32_64 = arith.constant 16 : i32
    %100 = tpu.dynamic_rotate %5 by %c16_i32_64 dim 1 : vector<4x256xf32>, i32 -> vector<4x256xf32>
    %c240_i32_65 = arith.constant 240 : i32
    %101 = tpu.dynamic_rotate %5 by %c240_i32_65 dim 1 : vector<4x256xf32>, i32 -> vector<4x256xf32>
    %c0_66 = arith.constant 0 : index
    %c0_67 = arith.constant 0 : index
    %102 = vector.load %arg6[%c0_66, %c0_67] : memref<16x256xf32, #tpu.memory_space<vmem>>, vector<1x256xf32>
    %103 = arith.subf %102, %99 : vector<1x256xf32>
    %104 = math.exp %103 : vector<1x256xf32>
    %cst_68 = arith.constant 0.000000e+00 : f32
    %105 = vector.broadcast %cst_68 : f32 to vector<1x256xf32>
    %106 = arith.select %8, %104, %105 : vector<1x256xi1>, vector<1x256xf32>
    %c255_i32_69 = arith.constant 255 : i32
    %107 = tpu.dynamic_rotate %106 by %c255_i32_69 dim 1 : vector<1x256xf32>, i32 -> vector<1x256xf32>
    %108 = vector.broadcast %107 : vector<1x256xf32> to vector<4x256xf32>
    %109 = arith.mulf %108, %100 : vector<4x256xf32>
    %c3_70 = arith.constant 3 : index
    %c0_71 = arith.constant 0 : index
    %110 = vector.load %arg6[%c3_70, %c0_71] : memref<16x256xf32, #tpu.memory_space<vmem>>, vector<1x256xf32>
    %111 = arith.subf %110, %99 : vector<1x256xf32>
    %112 = math.exp %111 : vector<1x256xf32>
    %113 = arith.addf %104, %112 : vector<1x256xf32>
    %cst_72 = arith.constant 0.000000e+00 : f32
    %114 = vector.broadcast %cst_72 : f32 to vector<1x256xf32>
    %115 = arith.select %17, %112, %114 : vector<1x256xi1>, vector<1x256xf32>
    %c255_i32_73 = arith.constant 255 : i32
    %116 = tpu.dynamic_rotate %115 by %c255_i32_73 dim 1 : vector<1x256xf32>, i32 -> vector<1x256xf32>
    %117 = vector.broadcast %116 : vector<1x256xf32> to vector<4x256xf32>
    %118 = arith.mulf %117, %5 : vector<4x256xf32>
    %119 = arith.addf %109, %118 : vector<4x256xf32>
    %c6_74 = arith.constant 6 : index
    %c0_75 = arith.constant 0 : index
    %120 = vector.load %arg6[%c6_74, %c0_75] : memref<16x256xf32, #tpu.memory_space<vmem>>, vector<1x256xf32>
    %121 = arith.subf %120, %99 : vector<1x256xf32>
    %122 = math.exp %121 : vector<1x256xf32>
    %123 = arith.addf %113, %122 : vector<1x256xf32>
    %cst_76 = arith.constant 0.000000e+00 : f32
    %124 = vector.broadcast %cst_76 : f32 to vector<1x256xf32>
    %125 = arith.select %23, %122, %124 : vector<1x256xi1>, vector<1x256xf32>
    %c255_i32_77 = arith.constant 255 : i32
    %126 = tpu.dynamic_rotate %125 by %c255_i32_77 dim 1 : vector<1x256xf32>, i32 -> vector<1x256xf32>
    %127 = vector.broadcast %126 : vector<1x256xf32> to vector<4x256xf32>
    %128 = arith.mulf %127, %101 : vector<4x256xf32>
    %129 = arith.addf %119, %128 : vector<4x256xf32>
    %c1_i32_78 = arith.constant 1 : i32
    %130 = tpu.dynamic_rotate %129 by %c1_i32_78 dim 1 : vector<4x256xf32>, i32 -> vector<4x256xf32>
    %c1_79 = arith.constant 1 : index
    %c0_80 = arith.constant 0 : index
    %131 = vector.load %arg6[%c1_79, %c0_80] : memref<16x256xf32, #tpu.memory_space<vmem>>, vector<1x256xf32>
    %132 = arith.subf %131, %99 : vector<1x256xf32>
    %133 = math.exp %132 : vector<1x256xf32>
    %134 = arith.addf %123, %133 : vector<1x256xf32>
    %cst_81 = arith.constant 0.000000e+00 : f32
    %135 = vector.broadcast %cst_81 : f32 to vector<1x256xf32>
    %136 = arith.select %11, %133, %135 : vector<1x256xi1>, vector<1x256xf32>
    %137 = vector.broadcast %136 : vector<1x256xf32> to vector<4x256xf32>
    %138 = arith.mulf %137, %100 : vector<4x256xf32>
    %c4_82 = arith.constant 4 : index
    %c0_83 = arith.constant 0 : index
    %139 = vector.load %arg6[%c4_82, %c0_83] : memref<16x256xf32, #tpu.memory_space<vmem>>, vector<1x256xf32>
    %140 = arith.subf %139, %99 : vector<1x256xf32>
    %141 = math.exp %140 : vector<1x256xf32>
    %142 = arith.addf %134, %141 : vector<1x256xf32>
    %143 = vector.broadcast %141 : vector<1x256xf32> to vector<4x256xf32>
    %144 = arith.mulf %143, %5 : vector<4x256xf32>
    %145 = arith.addf %138, %144 : vector<4x256xf32>
    %c7_84 = arith.constant 7 : index
    %c0_85 = arith.constant 0 : index
    %146 = vector.load %arg6[%c7_84, %c0_85] : memref<16x256xf32, #tpu.memory_space<vmem>>, vector<1x256xf32>
    %147 = arith.subf %146, %99 : vector<1x256xf32>
    %148 = math.exp %147 : vector<1x256xf32>
    %149 = arith.addf %142, %148 : vector<1x256xf32>
    %cst_86 = arith.constant 0.000000e+00 : f32
    %150 = vector.broadcast %cst_86 : f32 to vector<1x256xf32>
    %151 = arith.select %26, %148, %150 : vector<1x256xi1>, vector<1x256xf32>
    %152 = vector.broadcast %151 : vector<1x256xf32> to vector<4x256xf32>
    %153 = arith.mulf %152, %101 : vector<4x256xf32>
    %154 = arith.addf %145, %153 : vector<4x256xf32>
    %155 = arith.addf %130, %154 : vector<4x256xf32>
    %c2_87 = arith.constant 2 : index
    %c0_88 = arith.constant 0 : index
    %156 = vector.load %arg6[%c2_87, %c0_88] : memref<16x256xf32, #tpu.memory_space<vmem>>, vector<1x256xf32>
    %157 = arith.subf %156, %99 : vector<1x256xf32>
    %158 = math.exp %157 : vector<1x256xf32>
    %159 = arith.addf %149, %158 : vector<1x256xf32>
    %cst_89 = arith.constant 0.000000e+00 : f32
    %160 = vector.broadcast %cst_89 : f32 to vector<1x256xf32>
    %161 = arith.select %14, %158, %160 : vector<1x256xi1>, vector<1x256xf32>
    %c1_i32_90 = arith.constant 1 : i32
    %162 = tpu.dynamic_rotate %161 by %c1_i32_90 dim 1 : vector<1x256xf32>, i32 -> vector<1x256xf32>
    %163 = vector.broadcast %162 : vector<1x256xf32> to vector<4x256xf32>
    %164 = arith.mulf %163, %100 : vector<4x256xf32>
    %c5_91 = arith.constant 5 : index
    %c0_92 = arith.constant 0 : index
    %165 = vector.load %arg6[%c5_91, %c0_92] : memref<16x256xf32, #tpu.memory_space<vmem>>, vector<1x256xf32>
    %166 = arith.subf %165, %99 : vector<1x256xf32>
    %167 = math.exp %166 : vector<1x256xf32>
    %168 = arith.addf %159, %167 : vector<1x256xf32>
    %cst_93 = arith.constant 0.000000e+00 : f32
    %169 = vector.broadcast %cst_93 : f32 to vector<1x256xf32>
    %170 = arith.select %20, %167, %169 : vector<1x256xi1>, vector<1x256xf32>
    %c1_i32_94 = arith.constant 1 : i32
    %171 = tpu.dynamic_rotate %170 by %c1_i32_94 dim 1 : vector<1x256xf32>, i32 -> vector<1x256xf32>
    %172 = vector.broadcast %171 : vector<1x256xf32> to vector<4x256xf32>
    %173 = arith.mulf %172, %5 : vector<4x256xf32>
    %174 = arith.addf %164, %173 : vector<4x256xf32>
    %c8_95 = arith.constant 8 : index
    %c0_96 = arith.constant 0 : index
    %175 = vector.load %arg6[%c8_95, %c0_96] : memref<16x256xf32, #tpu.memory_space<vmem>>, vector<1x256xf32>
    %176 = arith.subf %175, %99 : vector<1x256xf32>
    %177 = math.exp %176 : vector<1x256xf32>
    %178 = arith.addf %168, %177 : vector<1x256xf32>
    %cst_97 = arith.constant 0.000000e+00 : f32
    %179 = vector.broadcast %cst_97 : f32 to vector<1x256xf32>
    %180 = arith.select %29, %177, %179 : vector<1x256xi1>, vector<1x256xf32>
    %c1_i32_98 = arith.constant 1 : i32
    %181 = tpu.dynamic_rotate %180 by %c1_i32_98 dim 1 : vector<1x256xf32>, i32 -> vector<1x256xf32>
    %182 = vector.broadcast %181 : vector<1x256xf32> to vector<4x256xf32>
    %183 = arith.mulf %182, %101 : vector<4x256xf32>
    %184 = arith.addf %174, %183 : vector<4x256xf32>
    %c255_i32_99 = arith.constant 255 : i32
    %185 = tpu.dynamic_rotate %184 by %c255_i32_99 dim 1 : vector<4x256xf32>, i32 -> vector<4x256xf32>
    %186 = arith.addf %155, %185 : vector<4x256xf32>
    %187 = tpu.reciprocal %178 {approx = true} : vector<1x256xf32> -> vector<1x256xf32>
    %188 = arith.mulf %178, %187 : vector<1x256xf32>
    %cst_100 = arith.constant 2.000000e+00 : f32
    %189 = vector.broadcast %cst_100 : f32 to vector<1x256xf32>
    %190 = arith.subf %189, %188 : vector<1x256xf32>
    %191 = arith.mulf %187, %190 : vector<1x256xf32>
    %192 = vector.broadcast %191 : vector<1x256xf32> to vector<4x256xf32>
    %193 = arith.mulf %186, %192 : vector<4x256xf32>
    %c0_101 = arith.constant 0 : index
    %c0_102 = arith.constant 0 : index
    %c0_103 = arith.constant 0 : index
    %194 = vector.load %arg5[%c0_101, %c0_102, %c0_103] : memref<1x4x256xf32, #tpu.memory_space<vmem>>, vector<1x4x256xf32>
    %195 = vector.shape_cast %194 : vector<1x4x256xf32> to vector<4x256xf32>
    %196 = vector.shape_cast %193 : vector<4x256xf32> to vector<1x4x256xf32>
    tpu.vector_store %arg5[%c0_101, %c0_102, %c0_103], %196 {strides = array<i32>} : memref<1x4x256xf32, #tpu.memory_space<vmem>>, vector<1x4x256xf32>,
    return
  }
  func.func @transform_0(%arg0: i32) -> (i32, i32) {
    %c0_i32 = arith.constant 0 : i32
    %c0_i32_0 = arith.constant 0 : i32
    %c0_i32_1 = arith.constant 0 : i32
    return %c0_i32, %c0_i32_0 : i32, i32
  }
  func.func @transform_1(%arg0: i32) -> (i32, i32, i32) {
    %c0_i32 = arith.constant 0 : i32
    %c0_i32_0 = arith.constant 0 : i32
    %c0_i32_1 = arith.constant 0 : i32
    return %arg0, %c0_i32, %c0_i32_0 : i32, i32, i32
  }
  func.func @transform_2(%arg0: i32) -> (i32, i32, i32) {
    %c0_i32 = arith.constant 0 : i32
    %c0_i32_0 = arith.constant 0 : i32
    %c0_i32_1 = arith.constant 0 : i32
    return %arg0, %c0_i32, %c0_i32_0 : i32, i32, i32
  }
  func.func @transform_3(%arg0: i32) -> (i32, i32, i32) {
    %c0_i32 = arith.constant 0 : i32
    %c0_i32_0 = arith.constant 0 : i32
    %c0_i32_1 = arith.constant 0 : i32
    return %arg0, %c0_i32, %c0_i32_0 : i32, i32, i32
  }
  func.func @transform_4(%arg0: i32) -> (i32, i32, i32) {
    %c0_i32 = arith.constant 0 : i32
    %c0_i32_0 = arith.constant 0 : i32
    %c0_i32_1 = arith.constant 0 : i32
    return %arg0, %c0_i32, %c0_i32_0 : i32, i32, i32
  }
}

</mosaic_0001>

<llo_original>
// kernel: tpu_custom_call.1
$region0: #{tpu_custom_call.1}
  #allocation0 [shape = 'u32[]', space=smem, size = 0x4, offset = 0x4, fixed_abs, tag = 'smem constant byte address 0x4 - core index']
  #allocation1 [shape = 'u32[72,128]{1,0:T(1,128)}', space=vmem, size = 0x9000, scoped, tag = 'internal scratch']
  #allocation2 [shape = 'f32[16,256]{1,0:T(8,128)}', space=vmem, size = 0x4000, scoped, tag = 'scratch operand']
  %s0 = inlined_call_operand.hbm [shape: f32[9,256], index: 0, kind: input, shape index: {}]
  %s1 = inlined_call_operand.hbm [shape: f32[2,4,256], index: 1, kind: input, shape index: {}]
  %s2 = inlined_call_operand.hbm [shape: f32[2,4,256], index: 2, kind: input, shape index: {}]
  %s3 = inlined_call_operand.hbm [shape: f32[2,4,256], index: 3, kind: input, shape index: {}]
  %s4 = inlined_call_operand.hbm [shape: f32[2,4,256], index: 4, kind: output, shape index: {}]
  %s5 = sld [smem:[#allocation0]]
  $region65: #{tpu_custom_call.1} parent=0
    _
  %s7 = ssub.s32 1, %s5
  %s8 = scalar_select 0, %s7, %s5
  $region1: #{tpu_custom_call.1} parent=0
    #allocation3 [shape = 'u8[16384]{0}', space=vmem, size = 0x4000, scoped, tag = 'input window, operand 0, single buffered']
    #allocation4 [shape = 's32[2]{0}', space=sflag, size = 0x8, scoped, tag = 'scoped memory for tpu_custom_call.1']
    #allocation5 [shape = 's32[2]{0}', space=sflag, size = 0x8, scoped, tag = 'scoped memory for tpu_custom_call.1']
    #allocation6 [shape = 'u8[8192]{0}', space=vmem, size = 0x2000, scoped, tag = 'input window, operand 1']
    #allocation7 [shape = 's32[2]{0}', space=sflag, size = 0x8, scoped, tag = 'scoped memory for tpu_custom_call.1']
    #allocation8 [shape = 'u8[8192]{0}', space=vmem, size = 0x2000, scoped, tag = 'input window, operand 2']
    #allocation9 [shape = 'u8[8192]{0}', space=vmem, size = 0x2000, scoped, tag = 'input window, operand 3']
    #allocation10 [shape = 's32[2]{0}', space=sflag, size = 0x8, scoped, tag = 'scoped memory for tpu_custom_call.1']
    #allocation11 [shape = 'u8[8192]{0}', space=vmem, size = 0x2000, scoped, tag = 'output window, operand 0']
    %9 = vsyncpa [#allocation4], 0
    %10 = vsyncpa [#allocation7], 0
    %s11 = scalar_lea.sflag [#allocation7], 1
    %12 = vsyncpa %s11, 0
    %13 = vsyncpa [#allocation10], 0
    %s14 = scalar_lea.sflag [#allocation10], 1
    %15 = vsyncpa %s14, 0
    %16 = vsyncpa [#allocation5], 0
    %s17 = scalar_lea.sflag [#allocation5], 1
    %18 = vsyncpa %s17, 0
    loop: start=0, step=1, limit=4
    $region2: #{tpu_custom_call.1} parent=1 // loop_pre_header
      _
    $region3: #{tpu_custom_call.1} parent=1 // loop_header
      %s20 = sphi 0, %s24
      %p21 = scmp.ge.s32.totalorder %s20, 4
      %s28 = sphi 0, %s28
      %s30 = sphi 0, %s28
      %s31 = sphi 0, %s30
      %s45 = sphi 0, %s31
      %s51 = sphi 0, %s53
      %s54 = sphi 0, %s51
      %s55 = sphi 0, %s54
      %s71 = sphi 0, %s55
      %s77 = sphi 0, %s79
      %s80 = sphi 0, %s77
      %s81 = sphi 0, %s80
      %s97 = sphi 0, %s81
      %s103 = sphi 0, %s105
      %s106 = sphi 0, %s103
      %s107 = sphi 0, %s106
      %s123 = sphi 0, %s107
      %s129 = sphi 0, %s131
      %s132 = sphi 0, %s129
      %s133 = sphi 0, %s132
      %s149 = sphi 0, %s133
    $region4: #{tpu_custom_call.1} parent=1 // loop_header_branch
      %23 = sbr.rel (%p21) target = $region8
    $region5: #{tpu_custom_call.1} parent=1 // loop_body
      %s25 = ssub.s32 %s20, 1
      %s26 = ssub.s32 %s20, 2
      %s27 = sadd.s32 %s20, 1
      %s29 = sadd.s32 %s28, 1
      %p32 = scmp.eq.s32.totalorder %s20, 1
      %p33 = scmp.ne.s32.totalorder %s28, %s30
      %p34 = scmp.eq.s32.totalorder %s20, 0
      %p35 = por %p33, %p34
      %p36 = scmp.ne.s32.totalorder %s28, %s30
      %p37 = scmp.eq.s32.totalorder %s25, 1
      %p38 = por %p36, %p37
      %p39 = scmp.ne.s32.totalorder %s30, %s31
      %p40 = scmp.eq.s32.totalorder %s25, 0
      %p41 = por %p39, %p40
      %p42 = scmp.ne.s32.totalorder %s30, %s31
      %p43 = scmp.eq.s32.totalorder %s26, 1
      %p44 = por %p42, %p43
      %p46 = scmp.ne.s32.totalorder %s31, %s45
      %p47 = scmp.eq.s32.totalorder %s26, 0
      %p48 = por %p46, %p47
      %s49 = ssub.s32 %s20, %s27
      %p50 = scmp.eq.s32.totalorder %s49, 0
      %s52 = sadd.s32 %s51, 1
      %s53 = scalar_select %p50, %s51, %s52
      %p56 = pneg %p50
      %p57 = scmp.eq.s32.totalorder %s20, 1
      %p58 = por %p56, %p57
      %p59 = scmp.ne.s32.totalorder %s51, %s54
      %p60 = scmp.eq.s32.totalorder %s20, 0
      %p61 = por %p59, %p60
      %p62 = scmp.ne.s32.totalorder %s51, %s54
      %p63 = scmp.eq.s32.totalorder %s25, 1
      %p64 = por %p62, %p63
      %p65 = scmp.ne.s32.totalorder %s54, %s55
      %p66 = scmp.eq.s32.totalorder %s25, 0
      %p67 = por %p65, %p66
      %p68 = scmp.ne.s32.totalorder %s54, %s55
      %p69 = scmp.eq.s32.totalorder %s26, 1
      %p70 = por %p68, %p69
      %p72 = scmp.ne.s32.totalorder %s55, %s71
      %p73 = scmp.eq.s32.totalorder %s26, 0
      %p74 = por %p72, %p73
      %s75 = ssub.s32 %s20, %s27
      %p76 = scmp.eq.s32.totalorder %s75, 0
      %s78 = sadd.s32 %s77, 1
      %s79 = scalar_select %p76, %s77, %s78
      %p82 = pneg %p76
      %p83 = scmp.eq.s32.totalorder %s20, 1
      %p84 = por %p82, %p83
      %p85 = scmp.ne.s32.totalorder %s77, %s80
      %p86 = scmp.eq.s32.totalorder %s20, 0
      %p87 = por %p85, %p86
      %p88 = scmp.ne.s32.totalorder %s77, %s80
      %p89 = scmp.eq.s32.totalorder %s25, 1
      %p90 = por %p88, %p89
      %p91 = scmp.ne.s32.totalorder %s80, %s81
      %p92 = scmp.eq.s32.totalorder %s25, 0
      %p93 = por %p91, %p92
      %p94 = scmp.ne.s32.totalorder %s80, %s81
      %p95 = scmp.eq.s32.totalorder %s26, 1
      %p96 = por %p94, %p95
      %p98 = scmp.ne.s32.totalorder %s81, %s97
      %p99 = scmp.eq.s32.totalorder %s26, 0
      %p100 = por %p98, %p99
      %s101 = ssub.s32 %s20, %s27
      %p102 = scmp.eq.s32.totalorder %s101, 0
      %s104 = sadd.s32 %s103, 1
      %s105 = scalar_select %p102, %s103, %s104
      %p108 = pneg %p102
      %p109 = scmp.eq.s32.totalorder %s20, 1
      %p110 = por %p108, %p109
      %p111 = scmp.ne.s32.totalorder %s103, %s106
      %p112 = scmp.eq.s32.totalorder %s20, 0
      %p113 = por %p111, %p112
      %p114 = scmp.ne.s32.totalorder %s103, %s106
      %p115 = scmp.eq.s32.totalorder %s25, 1
      %p116 = por %p114, %p115
      %p117 = scmp.ne.s32.totalorder %s106, %s107
      %p118 = scmp.eq.s32.totalorder %s25, 0
      %p119 = por %p117, %p118
      %p120 = scmp.ne.s32.totalorder %s106, %s107
      %p121 = scmp.eq.s32.totalorder %s26, 1
      %p122 = por %p120, %p121
      %p124 = scmp.ne.s32.totalorder %s107, %s123
      %p125 = scmp.eq.s32.totalorder %s26, 0
      %p126 = por %p124, %p125
      %s127 = ssub.s32 %s20, %s27
      %p128 = scmp.eq.s32.totalorder %s127, 0
      %s130 = sadd.s32 %s129, 1
      %s131 = scalar_select %p128, %s129, %s130
      %p134 = pneg %p128
      %p135 = scmp.eq.s32.totalorder %s20, 1
      %p136 = por %p134, %p135
      %p137 = scmp.ne.s32.totalorder %s129, %s132
      %p138 = scmp.eq.s32.totalorder %s20, 0
      %p139 = por %p137, %p138
      %p140 = scmp.ne.s32.totalorder %s129, %s132
      %p141 = scmp.eq.s32.totalorder %s25, 1
      %p142 = por %p140, %p141
      %p143 = scmp.ne.s32.totalorder %s132, %s133
      %p144 = scmp.eq.s32.totalorder %s25, 0
      %p145 = por %p143, %p144
      %p146 = scmp.ne.s32.totalorder %s132, %s133
      %p147 = scmp.eq.s32.totalorder %s26, 1
      %p148 = por %p146, %p147
      %p150 = scmp.ne.s32.totalorder %s133, %s149
      %p151 = scmp.eq.s32.totalorder %s26, 0
      %p152 = por %p150, %p151
      %p153 = scmp.le.s32.totalorder 1, %s20
      %p154 = scmp.lt.s32.totalorder %s20, 3
      %p155 = pnand %p153, %p154
      %p156 = pneg %p155
      // Predicated region
      $region9: #{tpu_custom_call.1} parent=5 // pred_check
        _
      $region10: #{tpu_custom_call.1} parent=5 // pred_check_branch
        %158 = sbr.rel (%p155) target = $region12
      $region11: #{tpu_custom_call.1} parent=5 // pred_region
        %s159 = ssub.s32 %s20, 1
        // Predicated region
        $region13: #{tpu_custom_call.1} parent=11 // pred_check
          %p160 = pneg %p41
        $region14: #{tpu_custom_call.1} parent=11 // pred_check_branch
          %162 = sbr.rel (%p160) target = $region16
        $region15: #{tpu_custom_call.1} parent=11 // pred_region
          %164 = vsyncadd [#allocation4], 0
          %s165 = sshll.u32 %s0, 4
          %s166 = int_to_ptr.hbm [resolvable:$true] %s165
          %s167 = sshll.u32 [#allocation3], 4
          %s168 = int_to_ptr.vmem [resolvable:$true] %s167
          %173 = dma.hbm_to_vmem [thread:$0]  %s166, 512, %s168, [#allocation4], 256, 256, 16
        $region16: #{tpu_custom_call.1} parent=11 // pred_fallthru
          _
      $region12: #{tpu_custom_call.1} parent=5 // pred_fallthru
        _
      %p174 = scmp.lt.s32.totalorder %s20, 2
      // Predicated region
      $region17: #{tpu_custom_call.1} parent=5 // pred_check
        %p175 = pneg %p174
      $region18: #{tpu_custom_call.1} parent=5 // pred_check_branch
        %177 = sbr.rel (%p175) target = $region20
      $region19: #{tpu_custom_call.1} parent=5 // pred_region
        // Predicated region
        $region21: #{tpu_custom_call.1} parent=19 // pred_check
          %p178 = pneg %p61
        $region22: #{tpu_custom_call.1} parent=19 // pred_check_branch
          %180 = sbr.rel (%p178) target = $region24
        $region23: #{tpu_custom_call.1} parent=19 // pred_region
          %s181 = sand.u32 %s20, 1
          %s182 = scalar_lea.sflag [#allocation7], %s181
          %s183 = sand.u32 %s51, 1
          %s184 = smul.addr %s183, 8
          %s185 = scalar_lea.vmem [#allocation6], %s184
          %187 = vsyncadd %s182, 0
          %s188 = smul.addr %s20, 2
          %s189 = smul.addr %s188, 4
          %s190 = scalar_lea.hbm %s1, %s189
          %s192 = sshll.u32 %s190, 4
          %s193 = int_to_ptr.hbm [resolvable:$true] %s192
          %s194 = sshll.u32 %s185, 4
          %s195 = int_to_ptr.vmem [resolvable:$true] %s194
          %197 = dma.hbm_to_vmem [thread:$0]  %s193, 128, %s195, %s182
        $region24: #{tpu_custom_call.1} parent=19 // pred_fallthru
          _
        // Predicated region
        $region25: #{tpu_custom_call.1} parent=19 // pred_check
          %p198 = pneg %p87
        $region26: #{tpu_custom_call.1} parent=19 // pred_check_branch
          %200 = sbr.rel (%p198) target = $region28
        $region27: #{tpu_custom_call.1} parent=19 // pred_region
          %s201 = sand.u32 %s20, 1
          %s202 = scalar_lea.sflag [#allocation7], %s201
          %s203 = sand.u32 %s77, 1
          %s204 = smul.addr %s203, 8
          %s205 = scalar_lea.vmem [#allocation8], %s204
          %207 = vsyncadd %s202, 0
          %s208 = smul.addr %s20, 2
          %s209 = smul.addr %s208, 4
          %s210 = scalar_lea.hbm %s2, %s209
          %s212 = sshll.u32 %s210, 4
          %s213 = int_to_ptr.hbm [resolvable:$true] %s212
          %s214 = sshll.u32 %s205, 4
          %s215 = int_to_ptr.vmem [resolvable:$true] %s214
          %217 = dma.hbm_to_vmem [thread:$0]  %s213, 128, %s215, %s202
        $region28: #{tpu_custom_call.1} parent=19 // pred_fallthru
          _
        // Predicated region
        $region29: #{tpu_custom_call.1} parent=19 // pred_check
          %p218 = pneg %p113
        $region30: #{tpu_custom_call.1} parent=19 // pred_check_branch
          %220 = sbr.rel (%p218) target = $region32
        $region31: #{tpu_custom_call.1} parent=19 // pred_region
          %s221 = sand.u32 %s103, 1
          %s222 = scalar_lea.sflag [#allocation10], %s221
          %s223 = sand.u32 %s103, 1
          %s224 = smul.addr %s223, 8
          %s225 = scalar_lea.vmem [#allocation9], %s224
          %227 = vsyncadd %s222, 0
          %s228 = smul.addr %s20, 2
          %s229 = smul.addr %s228, 4
          %s230 = scalar_lea.hbm %s3, %s229
          %s232 = sshll.u32 %s230, 4
          %s233 = int_to_ptr.hbm [resolvable:$true] %s232
          %s234 = sshll.u32 %s225, 4
          %s235 = int_to_ptr.vmem [resolvable:$true] %s234
          %237 = dma.hbm_to_vmem [thread:$0]  %s233, 128, %s235, %s222
        $region32: #{tpu_custom_call.1} parent=19 // pred_fallthru
          _
      $region20: #{tpu_custom_call.1} parent=5 // pred_fallthru
        _
      %p238 = scmp.le.s32.totalorder 1, %s20
      %p239 = scmp.lt.s32.totalorder %s20, 3
      %p240 = pnand %p238, %p239
      %p241 = pneg %p240
      // Predicated region
      $region33: #{tpu_custom_call.1} parent=5 // pred_check
        _
      $region34: #{tpu_custom_call.1} parent=5 // pred_check_branch
        %243 = sbr.rel (%p240) target = $region36
      $region35: #{tpu_custom_call.1} parent=5 // pred_region
        %s244 = ssub.s32 %s20, 1
        // Predicated region
        $region37: #{tpu_custom_call.1} parent=35 // pred_check
          %p245 = pneg %p41
        $region38: #{tpu_custom_call.1} parent=35 // pred_check_branch
          %247 = sbr.rel (%p245) target = $region40
        $region39: #{tpu_custom_call.1} parent=35 // pred_region
          %249 = dma.done [#allocation4], 512
        $region40: #{tpu_custom_call.1} parent=35 // pred_fallthru
          _
        %s250 = sand.u32 %s25, 1
        %s251 = scalar_lea.sflag [#allocation7], %s250
        %s252 = sand.u32 %s54, 1
        %s253 = smul.addr %s252, 8
        %s254 = scalar_lea.vmem [#allocation6], %s253
        // Predicated region
        $region41: #{tpu_custom_call.1} parent=35 // pred_check
          %p255 = pneg %p67
        $region42: #{tpu_custom_call.1} parent=35 // pred_check_branch
          %257 = sbr.rel (%p255) target = $region44
        $region43: #{tpu_custom_call.1} parent=35 // pred_region
          %259 = dma.done %s251, 128
        $region44: #{tpu_custom_call.1} parent=35 // pred_fallthru
          _
        %s260 = sand.u32 %s25, 1
        %s261 = scalar_lea.sflag [#allocation7], %s260
        %s262 = sand.u32 %s80, 1
        %s263 = smul.addr %s262, 8
        %s264 = scalar_lea.vmem [#allocation8], %s263
        // Predicated region
        $region45: #{tpu_custom_call.1} parent=35 // pred_check
          %p265 = pneg %p93
        $region46: #{tpu_custom_call.1} parent=35 // pred_check_branch
          %267 = sbr.rel (%p265) target = $region48
        $region47: #{tpu_custom_call.1} parent=35 // pred_region
          %269 = dma.done %s261, 128
        $region48: #{tpu_custom_call.1} parent=35 // pred_fallthru
          _
        %s270 = sand.u32 %s106, 1
        %s271 = scalar_lea.sflag [#allocation10], %s270
        %s272 = sand.u32 %s106, 1
        %s273 = smul.addr %s272, 8
        %s274 = scalar_lea.vmem [#allocation9], %s273
        // Predicated region
        $region49: #{tpu_custom_call.1} parent=35 // pred_check
          %p275 = pneg %p119
        $region50: #{tpu_custom_call.1} parent=35 // pred_check_branch
          %277 = sbr.rel (%p275) target = $region52
        $region51: #{tpu_custom_call.1} parent=35 // pred_region
          %279 = dma.done %s271, 128
        $region52: #{tpu_custom_call.1} parent=35 // pred_fallthru
          _
        %p280 = pneg %p41
        %p281 = pneg %p38
        %s282 = sand.u32 %s25, 1
        %s283 = scalar_lea.sflag [#allocation7], %s282
        %s284 = sand.u32 %s54, 1
        %s285 = smul.addr %s284, 8
        %s286 = scalar_lea.vmem [#allocation6], %s285
        %p287 = pneg %p67
        %p288 = pneg %p64
        %s289 = sand.u32 %s25, 1
        %s290 = scalar_lea.sflag [#allocation7], %s289
        %s291 = sand.u32 %s80, 1
        %s292 = smul.addr %s291, 8
        %s293 = scalar_lea.vmem [#allocation8], %s292
        %p294 = pneg %p93
        %p295 = pneg %p90
        %s296 = sand.u32 %s106, 1
        %s297 = scalar_lea.sflag [#allocation10], %s296
        %s298 = sand.u32 %s106, 1
        %s299 = smul.addr %s298, 8
        %s300 = scalar_lea.vmem [#allocation9], %s299
        %p301 = pneg %p119
        %p302 = pneg %p116
        %p303 = pneg %p145
        %p304 = pneg %p142
        %s305 = sand.u32 %s132, 1
        %s306 = scalar_lea.sflag [#allocation5], %s305
        %s307 = sand.u32 %s132, 1
        %s308 = smul.addr %s307, 8
        %s309 = scalar_lea.vmem [#allocation11], %s308
        %v310 = vld [vmem:[%s254] sm:$0xff]
        %v311 = vld [vmem:[%s264] sm:$0xff]
        %v312 = vld [vmem:[%s274] sm:$0xff]
        %v313 = vld [vmem:[#allocation3] ss:$8 sm:$0x3]
        %vm314 = vcmp.ne.f32.partialorder %v313, 0.0
        %s315 = scalar_lea.vmem [#allocation3], 1
        %v316 = vld [vmem:[%s315] ss:$8 sm:$0x3]
        %vm317 = vcmp.ne.f32.partialorder %v316, 0.0
        %s318 = scalar_lea.vmem [#allocation3], 2
        %v319 = vld [vmem:[%s318] ss:$8 sm:$0x3]
        %vm320 = vcmp.ne.f32.partialorder %v319, 0.0
        %s321 = scalar_lea.vmem [#allocation3], 3
        %v322 = vld [vmem:[%s321] ss:$8 sm:$0x3]
        %vm323 = vcmp.ne.f32.partialorder %v322, 0.0
        %s324 = scalar_lea.vmem [#allocation3], 5
        %v325 = vld [vmem:[%s324] ss:$8 sm:$0x3]
        %vm326 = vcmp.ne.f32.partialorder %v325, 0.0
        %s327 = scalar_lea.vmem [#allocation3], 6
        %v328 = vld [vmem:[%s327] ss:$8 sm:$0x3]
        %vm329 = vcmp.ne.f32.partialorder %v328, 0.0
        %s330 = scalar_lea.vmem [#allocation3], 7
        %v331 = vld [vmem:[%s330] ss:$8 sm:$0x3]
        %vm332 = vcmp.ne.f32.partialorder %v331, 0.0
        %s333 = scalar_lea.vmem [#allocation3], 16
        %v334 = vld [vmem:[%s333] ss:$8 sm:$0x3]
        %vm335 = vcmp.ne.f32.partialorder %v334, 0.0
        %337 = vst [vmem:[#allocation1] ss:$2 sm:$0xff] %v310
        %v338 = vld.sshfl [vmem:[#allocation1] sm:$0xff pattern:$0x75316420]
        %v339 = vld.sshfl [vmem:[#allocation1 + $0x8] sm:$0xff pattern:$0x75316420]
        %342 = vrot.lane.b32.xlu0 %v338, 127
        %v343 = vpop.permute.xlu0 %342
        %344 = vrot.lane.b32.xlu0 %v339, 127
        %v345 = vpop.permute.xlu0 %344
        %v346 = vlaneseq
        %v347 = vand.u32 %v346, 127
        %vm348 = vcmp.lt.s32.totalorder %v347, 127
        %v349 = vsel %vm348, %v343, %v345
        %v350 = vsel %vm348, %v345, %v343
        %351 = vst [vmem:[#allocation1] ss:$2 sm:$0xff] %v310
        %v352 = vld.sshfl [vmem:[#allocation1] sm:$0xff pattern:$0x75316420]
        %v353 = vld.sshfl [vmem:[#allocation1 + $0x8] sm:$0xff pattern:$0x75316420]
        %356 = vrot.lane.b32.xlu0 %v352, 1
        %v357 = vpop.permute.xlu0 %356
        %358 = vrot.lane.b32.xlu0 %v353, 1
        %v359 = vpop.permute.xlu0 %358
        %vm360 = vcmp.lt.s32.totalorder %v347, 1
        %v361 = vsel %vm360, %v357, %v359
        %v362 = vsel %vm360, %v359, %v357
        %364 = vst [vmem:[#allocation1] ss:$2 sm:$0xff] %v311
        %v365 = vld.sshfl [vmem:[#allocation1] sm:$0xff pattern:$0x75316420]
        %v366 = vld.sshfl [vmem:[#allocation1 + $0x8] sm:$0xff pattern:$0x75316420]
        %369 = vrot.lane.b32.xlu0 %v365, 16
        %v370 = vpop.permute.xlu0 %369
        %371 = vrot.lane.b32.xlu0 %v366, 16
        %v372 = vpop.permute.xlu0 %371
        %vm373 = vcmp.lt.s32.totalorder %v347, 16
        %v374 = vsel %vm373, %v370, %v372
        %v375 = vsel %vm373, %v372, %v370
        %v376 = vmul.f32 %v349, %v375
        %v377 = vmul.f32 %v350, %v374
        %vm378 = vcmask 1043456
        %v379 = vsel %vm378, %v376, 0.0
        %v380 = vrot.slane %v379, 4
        %v381 = vadd.f32 %v379, %v380
        %v382 = vrot.slane %v381, 2
        %v383 = vadd.f32 %v381, %v382
        %v384 = vrot.slane %v383, 1
        %v385 = vadd.f32 %v383, %v384
        %v386 = vsel %vm378, %v377, 0.0
        %v387 = vrot.slane %v386, 4
        %v388 = vadd.f32 %v386, %v387
        %v389 = vrot.slane %v388, 2
        %v390 = vadd.f32 %v388, %v389
        %v391 = vrot.slane %v390, 1
        %v392 = vadd.f32 %v390, %v391
        %393 = vrot.lane.b32.xlu0 %v385, 1
        %v394 = vpop.permute.xlu0 %393
        %395 = vrot.lane.b32.xlu0 %v392, 1
        %v396 = vpop.permute.xlu0 %395
        %v397 = vsel %vm360, %v394, %v396
        %v398 = vsel %vm360, %v396, %v394
        %v401 = vrot.slane %v397, 7
        %vm402 = vcmask 1040384
        %v403 = vsel %vm402, %v398, %v401
        %v405 = vsel %vm314, %v403, 0.0
        %v406 = vlaneseq
        %vm407 = vcmp.ge.s32.totalorder %v406, 0
        %vm408 = vcmp.lt.s32.totalorder %v406, 256
        %vm409 = vmand %vm407, %vm408
        %410 = vst.msk [vmem:[#allocation2] ss:$8 sm:$0x3] %vm409, %v405
        %411 = vst.msk [vmem:[#allocation2] ss:$8 sm:$0x0] %vm409, %v405
        %v414 = vrot.slane %v374, 4
        %v415 = vsel %vm378, %v375, %v414
        %v417 = vmul.f32 %v310, %v415
        %419 = vst [vmem:[#allocation1] ss:$2 sm:$0xff] %v417
        %v420 = vld.sshfl [vmem:[#allocation1] sm:$0xff pattern:$0x75316420]
        %v421 = vld.sshfl [vmem:[#allocation1 + $0x8] sm:$0xff pattern:$0x75316420]
        %v424 = vsel %vm378, %v420, 0.0
        %v425 = vrot.slane %v424, 4
        %v426 = vadd.f32 %v424, %v425
        %v427 = vrot.slane %v426, 2
        %v428 = vadd.f32 %v426, %v427
        %v429 = vrot.slane %v428, 1
        %v430 = vadd.f32 %v428, %v429
        %v431 = vsel %vm378, %v421, 0.0
        %v432 = vrot.slane %v431, 4
        %v433 = vadd.f32 %v431, %v432
        %v434 = vrot.slane %v433, 2
        %v435 = vadd.f32 %v433, %v434
        %v436 = vrot.slane %v435, 1
        %v437 = vadd.f32 %v435, %v436
        %v440 = vrot.slane %v437, 7
        %v441 = vsel %vm402, %v430, %v440
        %v443 = vsel %vm317, %v441, 0.0
        %s444 = scalar_lea.vmem [#allocation2], 1
        %445 = vst.msk [vmem:[%s444] ss:$8 sm:$0x3] %vm409, %v443
        %446 = vst.msk [vmem:[%s444] ss:$8 sm:$0x0] %vm409, %v443
        %v447 = vmax.f32 %v405, %v443
        %v448 = vmul.f32 %v362, %v375
        %v449 = vmul.f32 %v361, %v374
        %v450 = vsel %vm378, %v448, 0.0
        %v451 = vrot.slane %v450, 4
        %v452 = vadd.f32 %v450, %v451
        %v453 = vrot.slane %v452, 2
        %v454 = vadd.f32 %v452, %v453
        %v455 = vrot.slane %v454, 1
        %v456 = vadd.f32 %v454, %v455
        %v457 = vsel %vm378, %v449, 0.0
        %v458 = vrot.slane %v457, 4
        %v459 = vadd.f32 %v457, %v458
        %v460 = vrot.slane %v459, 2
        %v461 = vadd.f32 %v459, %v460
        %v462 = vrot.slane %v461, 1
        %v463 = vadd.f32 %v461, %v462
        %464 = vrot.lane.b32.xlu0 %v456, 127
        %v465 = vpop.permute.xlu0 %464
        %466 = vrot.lane.b32.xlu0 %v463, 127
        %v467 = vpop.permute.xlu0 %466
        %v468 = vsel %vm348, %v465, %v467
        %v469 = vsel %vm348, %v467, %v465
        %v472 = vrot.slane %v469, 7
        %v473 = vsel %vm402, %v468, %v472
        %v475 = vsel %vm320, %v473, 0.0
        %s476 = scalar_lea.vmem [#allocation2], 2
        %477 = vst.msk [vmem:[%s476] ss:$8 sm:$0x3] %vm409, %v475
        %478 = vst.msk [vmem:[%s476] ss:$8 sm:$0x0] %vm409, %v475
        %v479 = vmax.f32 %v447, %v475
        %480 = vst [vmem:[#allocation1] ss:$2 sm:$0xff] %v311
        %v481 = vld.sshfl [vmem:[#allocation1] sm:$0xff pattern:$0x75316420]
        %v482 = vld.sshfl [vmem:[#allocation1 + $0x8] sm:$0xff pattern:$0x75316420]
        %v485 = vmul.f32 %v349, %v481
        %v486 = vmul.f32 %v350, %v482
        %v487 = vsel %vm378, %v485, 0.0
        %v488 = vrot.slane %v487, 4
        %v489 = vadd.f32 %v487, %v488
        %v490 = vrot.slane %v489, 2
        %v491 = vadd.f32 %v489, %v490
        %v492 = vrot.slane %v491, 1
        %v493 = vadd.f32 %v491, %v492
        %v494 = vsel %vm378, %v486, 0.0
        %v495 = vrot.slane %v494, 4
        %v496 = vadd.f32 %v494, %v495
        %v497 = vrot.slane %v496, 2
        %v498 = vadd.f32 %v496, %v497
        %v499 = vrot.slane %v498, 1
        %v500 = vadd.f32 %v498, %v499
        %501 = vrot.lane.b32.xlu0 %v493, 1
        %v502 = vpop.permute.xlu0 %501
        %503 = vrot.lane.b32.xlu0 %v500, 1
        %v504 = vpop.permute.xlu0 %503
        %v505 = vsel %vm360, %v502, %v504
        %v506 = vsel %vm360, %v504, %v502
        %v509 = vrot.slane %v505, 7
        %v510 = vsel %vm402, %v506, %v509
        %v512 = vsel %vm323, %v510, 0.0
        %s513 = scalar_lea.vmem [#allocation2], 3
        %514 = vst.msk [vmem:[%s513] ss:$8 sm:$0x3] %vm409, %v512
        %515 = vst.msk [vmem:[%s513] ss:$8 sm:$0x0] %vm409, %v512
        %v516 = vmax.f32 %v479, %v512
        %v517 = vmul.f32 %v310, %v311
        %519 = vst [vmem:[#allocation1] ss:$2 sm:$0xff] %v517
        %v520 = vld.sshfl [vmem:[#allocation1] sm:$0xff pattern:$0x75316420]
        %v521 = vld.sshfl [vmem:[#allocation1 + $0x8] sm:$0xff pattern:$0x75316420]
        %v524 = vsel %vm378, %v520, 0.0
        %v525 = vrot.slane %v524, 4
        %v526 = vadd.f32 %v524, %v525
        %v527 = vrot.slane %v526, 2
        %v528 = vadd.f32 %v526, %v527
        %v529 = vrot.slane %v528, 1
        %v530 = vadd.f32 %v528, %v529
        %v531 = vsel %vm378, %v521, 0.0
        %v532 = vrot.slane %v531, 4
        %v533 = vadd.f32 %v531, %v532
        %v534 = vrot.slane %v533, 2
        %v535 = vadd.f32 %v533, %v534
        %v536 = vrot.slane %v535, 1
        %v537 = vadd.f32 %v535, %v536
        %v540 = vrot.slane %v537, 7
        %v541 = vsel %vm402, %v530, %v540
        %s543 = scalar_lea.vmem [#allocation2], 4
        %544 = vst.msk [vmem:[%s543] ss:$8 sm:$0x3] %vm409, %v541
        %545 = vst.msk [vmem:[%s543] ss:$8 sm:$0x0] %vm409, %v541
        %v546 = vmax.f32 %v516, %v541
        %547 = vst [vmem:[#allocation1] ss:$2 sm:$0xff] %v311
        %v548 = vld.sshfl [vmem:[#allocation1] sm:$0xff pattern:$0x75316420]
        %v549 = vld.sshfl [vmem:[#allocation1 + $0x8] sm:$0xff pattern:$0x75316420]
        %v552 = vmul.f32 %v362, %v548
        %v553 = vmul.f32 %v361, %v549
        %v554 = vsel %vm378, %v552, 0.0
        %v555 = vrot.slane %v554, 4
        %v556 = vadd.f32 %v554, %v555
        %v557 = vrot.slane %v556, 2
        %v558 = vadd.f32 %v556, %v557
        %v559 = vrot.slane %v558, 1
        %v560 = vadd.f32 %v558, %v559
        %v561 = vsel %vm378, %v553, 0.0
        %v562 = vrot.slane %v561, 4
        %v563 = vadd.f32 %v561, %v562
        %v564 = vrot.slane %v563, 2
        %v565 = vadd.f32 %v563, %v564
        %v566 = vrot.slane %v565, 1
        %v567 = vadd.f32 %v565, %v566
        %568 = vrot.lane.b32.xlu0 %v560, 127
        %v569 = vpop.permute.xlu0 %568
        %570 = vrot.lane.b32.xlu0 %v567, 127
        %v571 = vpop.permute.xlu0 %570
        %v572 = vsel %vm348, %v569, %v571
        %v573 = vsel %vm348, %v571, %v569
        %v576 = vrot.slane %v573, 7
        %v577 = vsel %vm402, %v572, %v576
        %v579 = vsel %vm326, %v577, 0.0
        %s580 = scalar_lea.vmem [#allocation2], 5
        %581 = vst.msk [vmem:[%s580] ss:$8 sm:$0x3] %vm409, %v579
        %582 = vst.msk [vmem:[%s580] ss:$8 sm:$0x0] %vm409, %v579
        %v583 = vmax.f32 %v546, %v579
        %584 = vst [vmem:[#allocation1] ss:$2 sm:$0xff] %v311
        %v585 = vld.sshfl [vmem:[#allocation1] sm:$0xff pattern:$0x75316420]
        %v586 = vld.sshfl [vmem:[#allocation1 + $0x8] sm:$0xff pattern:$0x75316420]
        %589 = vrot.lane.b32.xlu0 %v585, 112
        %v590 = vpop.permute.xlu0 %589
        %591 = vrot.lane.b32.xlu0 %v586, 112
        %v592 = vpop.permute.xlu0 %591
        %vm593 = vcmp.lt.s32.totalorder %v347, 112
        %v594 = vsel %vm593, %v590, %v592
        %v595 = vsel %vm593, %v592, %v590
        %v596 = vmul.f32 %v349, %v594
        %v597 = vmul.f32 %v350, %v595
        %v598 = vsel %vm378, %v596, 0.0
        %v599 = vrot.slane %v598, 4
        %v600 = vadd.f32 %v598, %v599
        %v601 = vrot.slane %v600, 2
        %v602 = vadd.f32 %v600, %v601
        %v603 = vrot.slane %v602, 1
        %v604 = vadd.f32 %v602, %v603
        %v605 = vsel %vm378, %v597, 0.0
        %v606 = vrot.slane %v605, 4
        %v607 = vadd.f32 %v605, %v606
        %v608 = vrot.slane %v607, 2
        %v609 = vadd.f32 %v607, %v608
        %v610 = vrot.slane %v609, 1
        %v611 = vadd.f32 %v609, %v610
        %612 = vrot.lane.b32.xlu0 %v604, 1
        %v613 = vpop.permute.xlu0 %612
        %614 = vrot.lane.b32.xlu0 %v611, 1
        %v615 = vpop.permute.xlu0 %614
        %v616 = vsel %vm360, %v613, %v615
        %v617 = vsel %vm360, %v615, %v613
        %v620 = vrot.slane %v616, 7
        %v621 = vsel %vm402, %v617, %v620
        %v623 = vsel %vm329, %v621, 0.0
        %s624 = scalar_lea.vmem [#allocation2], 6
        %625 = vst.msk [vmem:[%s624] ss:$8 sm:$0x3] %vm409, %v623
        %626 = vst.msk [vmem:[%s624] ss:$8 sm:$0x0] %vm409, %v623
        %v627 = vmax.f32 %v583, %v623
        %v630 = vrot.slane %v595, 4
        %v631 = vsel %vm378, %v594, %v630
        %v633 = vmul.f32 %v310, %v631
        %635 = vst [vmem:[#allocation1] ss:$2 sm:$0xff] %v633
        %v636 = vld.sshfl [vmem:[#allocation1] sm:$0xff pattern:$0x75316420]
        %v637 = vld.sshfl [vmem:[#allocation1 + $0x8] sm:$0xff pattern:$0x75316420]
        %v640 = vsel %vm378, %v636, 0.0
        %v641 = vrot.slane %v640, 4
        %v642 = vadd.f32 %v640, %v641
        %v643 = vrot.slane %v642, 2
        %v644 = vadd.f32 %v642, %v643
        %v645 = vrot.slane %v644, 1
        %v646 = vadd.f32 %v644, %v645
        %v647 = vsel %vm378, %v637, 0.0
        %v648 = vrot.slane %v647, 4
        %v649 = vadd.f32 %v647, %v648
        %v650 = vrot.slane %v649, 2
        %v651 = vadd.f32 %v649, %v650
        %v652 = vrot.slane %v651, 1
        %v653 = vadd.f32 %v651, %v652
        %v656 = vrot.slane %v653, 7
        %v657 = vsel %vm402, %v646, %v656
        %v659 = vsel %vm332, %v657, 0.0
        %s660 = scalar_lea.vmem [#allocation2], 7
        %661 = vst.msk [vmem:[%s660] ss:$8 sm:$0x3] %vm409, %v659
        %662 = vst.msk [vmem:[%s660] ss:$8 sm:$0x0] %vm409, %v659
        %v663 = vmax.f32 %v627, %v659
        %v664 = vmul.f32 %v362, %v594
        %v665 = vmul.f32 %v361, %v595
        %v666 = vsel %vm378, %v664, 0.0
        %v667 = vrot.slane %v666, 4
        %v668 = vadd.f32 %v666, %v667
        %v669 = vrot.slane %v668, 2
        %v670 = vadd.f32 %v668, %v669
        %v671 = vrot.slane %v670, 1
        %v672 = vadd.f32 %v670, %v671
        %v673 = vsel %vm378, %v665, 0.0
        %v674 = vrot.slane %v673, 4
        %v675 = vadd.f32 %v673, %v674
        %v676 = vrot.slane %v675, 2
        %v677 = vadd.f32 %v675, %v676
        %v678 = vrot.slane %v677, 1
        %v679 = vadd.f32 %v677, %v678
        %680 = vrot.lane.b32.xlu0 %v672, 127
        %v681 = vpop.permute.xlu0 %680
        %682 = vrot.lane.b32.xlu0 %v679, 127
        %v683 = vpop.permute.xlu0 %682
        %v684 = vsel %vm348, %v681, %v683
        %v685 = vsel %vm348, %v683, %v681
        %v688 = vrot.slane %v685, 7
        %v689 = vsel %vm402, %v684, %v688
        %v691 = vsel %vm335, %v689, 0.0
        %s692 = scalar_lea.vmem [#allocation2], 16
        %693 = vst.msk [vmem:[%s692] ss:$8 sm:$0x3] %vm409, %v691
        %694 = vst.msk [vmem:[%s692] ss:$8 sm:$0x0] %vm409, %v691
        %v695 = vmax.f32 %v663, %v691
        %697 = vst [vmem:[#allocation1] ss:$2 sm:$0xff] %v312
        %v698 = vld.sshfl [vmem:[#allocation1] sm:$0xff pattern:$0x75316420]
        %v699 = vld.sshfl [vmem:[#allocation1 + $0x8] sm:$0xff pattern:$0x75316420]
        %702 = vrot.lane.b32.xlu0 %v698, 16
        %v703 = vpop.permute.xlu0 %702
        %704 = vrot.lane.b32.xlu0 %v699, 16
        %v705 = vpop.permute.xlu0 %704
        %v706 = vsel %vm373, %v703, %v705
        %v707 = vsel %vm373, %v705, %v703
        %708 = vst [vmem:[#allocation1] ss:$2 sm:$0xff] %v312
        %v709 = vld.sshfl [vmem:[#allocation1] sm:$0xff pattern:$0x75316420]
        %v710 = vld.sshfl [vmem:[#allocation1 + $0x8] sm:$0xff pattern:$0x75316420]
        %713 = vrot.lane.b32.xlu0 %v709, 112
        %v714 = vpop.permute.xlu0 %713
        %715 = vrot.lane.b32.xlu0 %v710, 112
        %v716 = vpop.permute.xlu0 %715
        %v717 = vsel %vm593, %v714, %v716
        %v718 = vsel %vm593, %v716, %v714
        %v719 = vld [vmem:[#allocation2] ss:$8 sm:$0x3]
        %v720 = vsub.f32 %v719, %v695
        %v721 = vmul.f32 %v720, 1.442695
        %v722 = vpow.pop %v721
        %v723 = vsel %vm314, %v722, 0.0
        %v725 = vperm.slane %v723, 0
        %v726 = vperm.slane %v723, 1
        %729 = vrot.lane.b32.xlu0 %v725, 127
        %v730 = vpop.permute.xlu0 %729
        %731 = vrot.lane.b32.xlu0 %v726, 127
        %v732 = vpop.permute.xlu0 %731
        %v733 = vsel %vm348, %v730, %v732
        %v734 = vsel %vm348, %v732, %v730
        %v735 = vperm.slane %v733, 0
        %v736 = vperm.slane %v734, 0
        %v737 = vmul.f32 %v735, %v707
        %v738 = vmul.f32 %v736, %v706
        %v739 = vld [vmem:[%s513] ss:$8 sm:$0x3]
        %v740 = vsub.f32 %v739, %v695
        %v741 = vmul.f32 %v740, 1.442695
        %v742 = vpow.pop %v741
        %v743 = vadd.f32 %v722, %v742
        %v744 = vsel %vm323, %v742, 0.0
        %v746 = vperm.slane %v744, 0
        %v747 = vperm.slane %v744, 1
        %750 = vrot.lane.b32.xlu0 %v746, 127
        %v751 = vpop.permute.xlu0 %750
        %752 = vrot.lane.b32.xlu0 %v747, 127
        %v753 = vpop.permute.xlu0 %752
        %v754 = vsel %vm348, %v751, %v753
        %v755 = vsel %vm348, %v753, %v751
        %v756 = vperm.slane %v754, 0
        %v757 = vperm.slane %v755, 0
        %758 = vst [vmem:[#allocation1] ss:$2 sm:$0xff] %v312
        %v759 = vld.sshfl [vmem:[#allocation1] sm:$0xff pattern:$0x75316420]
        %v760 = vld.sshfl [vmem:[#allocation1 + $0x8] sm:$0xff pattern:$0x75316420]
        %v763 = vmul.f32 %v756, %v759
        %v764 = vmul.f32 %v757, %v760
        %v765 = vadd.f32 %v737, %v763
        %v766 = vadd.f32 %v738, %v764
        %v767 = vld [vmem:[%s624] ss:$8 sm:$0x3]
        %v768 = vsub.f32 %v767, %v695
        %v769 = vmul.f32 %v768, 1.442695
        %v770 = vpow.pop %v769
        %v771 = vadd.f32 %v743, %v770
        %v772 = vsel %vm329, %v770, 0.0
        %v774 = vperm.slane %v772, 0
        %v775 = vperm.slane %v772, 1
        %778 = vrot.lane.b32.xlu0 %v774, 127
        %v779 = vpop.permute.xlu0 %778
        %780 = vrot.lane.b32.xlu0 %v775, 127
        %v781 = vpop.permute.xlu0 %780
        %v782 = vsel %vm348, %v779, %v781
        %v783 = vsel %vm348, %v781, %v779
        %v784 = vperm.slane %v782, 0
        %v785 = vperm.slane %v783, 0
        %v786 = vmul.f32 %v784, %v717
        %v787 = vmul.f32 %v785, %v718
        %v788 = vadd.f32 %v765, %v786
        %v789 = vadd.f32 %v766, %v787
        %790 = vrot.lane.b32.xlu0 %v788, 1
        %v791 = vpop.permute.xlu0 %790
        %792 = vrot.lane.b32.xlu0 %v789, 1
        %v793 = vpop.permute.xlu0 %792
        %v794 = vsel %vm360, %v791, %v793
        %v795 = vsel %vm360, %v793, %v791
        %v796 = vld [vmem:[%s444] ss:$8 sm:$0x3]
        %v797 = vsub.f32 %v796, %v695
        %v798 = vmul.f32 %v797, 1.442695
        %v799 = vpow.pop %v798
        %v800 = vadd.f32 %v771, %v799
        %v801 = vsel %vm317, %v799, 0.0
        %v803 = vperm.slane %v801, 0
        %v804 = vperm.slane %v801, 1
        %v807 = vmul.f32 %v803, %v707
        %v808 = vmul.f32 %v804, %v706
        %v809 = vld [vmem:[%s543] ss:$8 sm:$0x3]
        %v810 = vsub.f32 %v809, %v695
        %v811 = vmul.f32 %v810, 1.442695
        %v812 = vpow.pop %v811
        %v813 = vadd.f32 %v800, %v812
        %v815 = vperm.slane %v812, 0
        %v816 = vperm.slane %v812, 1
        %819 = vst [vmem:[#allocation1] ss:$2 sm:$0xff] %v312
        %v820 = vld.sshfl [vmem:[#allocation1] sm:$0xff pattern:$0x75316420]
        %v821 = vld.sshfl [vmem:[#allocation1 + $0x8] sm:$0xff pattern:$0x75316420]
        %v824 = vmul.f32 %v815, %v820
        %v825 = vmul.f32 %v816, %v821
        %v826 = vadd.f32 %v807, %v824
        %v827 = vadd.f32 %v808, %v825
        %v828 = vld [vmem:[%s660] ss:$8 sm:$0x3]
        %v829 = vsub.f32 %v828, %v695
        %v830 = vmul.f32 %v829, 1.442695
        %v831 = vpow.pop %v830
        %v832 = vadd.f32 %v813, %v831
        %v833 = vsel %vm332, %v831, 0.0
        %v835 = vperm.slane %v833, 0
        %v836 = vperm.slane %v833, 1
        %v839 = vmul.f32 %v835, %v717
        %v840 = vmul.f32 %v836, %v718
        %v841 = vadd.f32 %v826, %v839
        %v842 = vadd.f32 %v827, %v840
        %v843 = vadd.f32 %v795, %v841
        %v844 = vadd.f32 %v794, %v842
        %v845 = vld [vmem:[%s476] ss:$8 sm:$0x3]
        %v846 = vsub.f32 %v845, %v695
        %v847 = vmul.f32 %v846, 1.442695
        %v848 = vpow.pop %v847
        %v849 = vadd.f32 %v832, %v848
        %v850 = vsel %vm320, %v848, 0.0
        %v852 = vperm.slane %v850, 0
        %v853 = vperm.slane %v850, 1
        %856 = vrot.lane.b32.xlu0 %v852, 1
        %v857 = vpop.permute.xlu0 %856
        %858 = vrot.lane.b32.xlu0 %v853, 1
        %v859 = vpop.permute.xlu0 %858
        %v860 = vsel %vm360, %v857, %v859
        %v861 = vsel %vm360, %v859, %v857
        %v862 = vperm.slane %v861, 0
        %v863 = vperm.slane %v860, 0
        %v864 = vmul.f32 %v862, %v707
        %v865 = vmul.f32 %v863, %v706
        %v866 = vld [vmem:[%s580] ss:$8 sm:$0x3]
        %v867 = vsub.f32 %v866, %v695
        %v868 = vmul.f32 %v867, 1.442695
        %v869 = vpow.pop %v868
        %v870 = vadd.f32 %v849, %v869
        %v871 = vsel %vm326, %v869, 0.0
        %v873 = vperm.slane %v871, 0
        %v874 = vperm.slane %v871, 1
        %877 = vrot.lane.b32.xlu0 %v873, 1
        %v878 = vpop.permute.xlu0 %877
        %879 = vrot.lane.b32.xlu0 %v874, 1
        %v880 = vpop.permute.xlu0 %879
        %v881 = vsel %vm360, %v878, %v880
        %v882 = vsel %vm360, %v880, %v878
        %v883 = vperm.slane %v882, 0
        %v884 = vperm.slane %v881, 0
        %885 = vst [vmem:[#allocation1] ss:$2 sm:$0xff] %v312
        %v886 = vld.sshfl [vmem:[#allocation1] sm:$0xff pattern:$0x75316420]
        %v887 = vld.sshfl [vmem:[#allocation1 + $0x8] sm:$0xff pattern:$0x75316420]
        %v890 = vmul.f32 %v883, %v886
        %v891 = vmul.f32 %v884, %v887
        %v892 = vadd.f32 %v864, %v890
        %v893 = vadd.f32 %v865, %v891
        %v894 = vld [vmem:[%s692] ss:$8 sm:$0x3]
        %v895 = vsub.f32 %v894, %v695
        %v896 = vmul.f32 %v895, 1.442695
        %v897 = vpow.pop %v896
        %v898 = vadd.f32 %v870, %v897
        %v899 = vsel %vm335, %v897, 0.0
        %v901 = vperm.slane %v899, 0
        %v902 = vperm.slane %v899, 1
        %905 = vrot.lane.b32.xlu0 %v901, 1
        %v906 = vpop.permute.xlu0 %905
        %907 = vrot.lane.b32.xlu0 %v902, 1
        %v908 = vpop.permute.xlu0 %907
        %v909 = vsel %vm360, %v906, %v908
        %v910 = vsel %vm360, %v908, %v906
        %v911 = vperm.slane %v910, 0
        %v912 = vperm.slane %v909, 0
        %v913 = vmul.f32 %v911, %v717
        %v914 = vmul.f32 %v912, %v718
        %v915 = vadd.f32 %v892, %v913
        %v916 = vadd.f32 %v893, %v914
        %917 = vrot.lane.b32.xlu0 %v915, 127
        %v918 = vpop.permute.xlu0 %917
        %919 = vrot.lane.b32.xlu0 %v916, 127
        %v920 = vpop.permute.xlu0 %919
        %v921 = vsel %vm348, %v918, %v920
        %v922 = vsel %vm348, %v920, %v918
        %v923 = vadd.f32 %v843, %v921
        %v924 = vadd.f32 %v844, %v922
        %v925 = vrcp.pop %v898
        %v926 = vmul.f32 %v898, %v925
        %v927 = vsub.f32 2.0, %v926
        %v928 = vmul.f32 %v925, %v927
        %v930 = vperm.slane %v928, 0
        %v931 = vperm.slane %v928, 1
        %v934 = vmul.f32 %v923, %v930
        %v935 = vmul.f32 %v924, %v931
        %v938 = vrot.slane %v935, 4
        %v939 = vsel %vm378, %v934, %v938
        %941 = vst [vmem:[%s309] sm:$0xff] %v939
        %s942 = sand.u32 %s132, 1
        %s943 = scalar_lea.sflag [#allocation5], %s942
        %s944 = sand.u32 %s132, 1
        %s945 = smul.addr %s944, 8
        %s946 = scalar_lea.vmem [#allocation11], %s945
        // Predicated region
        $region53: #{tpu_custom_call.1} parent=35 // pred_check
          %p947 = pneg %p142
        $region54: #{tpu_custom_call.1} parent=35 // pred_check_branch
          %949 = sbr.rel (%p947) target = $region56
        $region55: #{tpu_custom_call.1} parent=35 // pred_region
          %951 = vsyncadd %s943, 0
          %s952 = smul.addr %s25, 2
          %s953 = smul.addr %s952, 4
          %s954 = scalar_lea.hbm %s4, %s953
          %s956 = sshll.u32 %s946, 4
          %s957 = int_to_ptr.vmem [resolvable:$true] %s956
          %s958 = sshll.u32 %s954, 4
          %s959 = int_to_ptr.hbm [resolvable:$true] %s958
          %961 = dma.vmem_to_hbm [thread:$0]  %s957, 128, %s959, %s943
        $region56: #{tpu_custom_call.1} parent=35 // pred_fallthru
          _
      $region36: #{tpu_custom_call.1} parent=5 // pred_fallthru
        _
      %p962 = scmp.le.s32.totalorder 2, %s20
      // Predicated region
      $region57: #{tpu_custom_call.1} parent=5 // pred_check
        %p963 = pneg %p962
      $region58: #{tpu_custom_call.1} parent=5 // pred_check_branch
        %965 = sbr.rel (%p963) target = $region60
      $region59: #{tpu_custom_call.1} parent=5 // pred_region
        %s966 = ssub.s32 %s20, 2
        // Predicated region
        $region61: #{tpu_custom_call.1} parent=59 // pred_check
          %p967 = pneg %p148
        $region62: #{tpu_custom_call.1} parent=59 // pred_check_branch
          %969 = sbr.rel (%p967) target = $region64
        $region63: #{tpu_custom_call.1} parent=59 // pred_region
          %s970 = sand.u32 %s133, 1
          %s971 = scalar_lea.sflag [#allocation5], %s970
          %s972 = sand.u32 %s133, 1
          %s973 = smul.addr %s972, 8
          %s974 = scalar_lea.vmem [#allocation11], %s973
          %976 = dma.done %s971, 128
        $region64: #{tpu_custom_call.1} parent=59 // pred_fallthru
          _
      $region60: #{tpu_custom_call.1} parent=5 // pred_fallthru
        _
    $region6: #{tpu_custom_call.1} parent=1 // loop_footer
      %s24 = sadd.s32 1, %s20
    $region7: #{tpu_custom_call.1} parent=1 // loop_footer_branch
      %19 = sbr.rel target = $region3
    $region8: #{tpu_custom_call.1} parent=1 // loop_exit
      _
    %977 = vsyncpa [#allocation4], 1
    %s978 = scalar_lea.sflag [#allocation4], 1
    %979 = vsyncpa %s978, 1
    %980 = vsyncpa [#allocation7], 1
    %s981 = scalar_lea.sflag [#allocation7], 1
    %982 = vsyncpa %s981, 1
    %983 = vsyncpa [#allocation10], 1
    %s984 = scalar_lea.sflag [#allocation10], 1
    %985 = vsyncpa %s984, 1
    %986 = vsyncpa [#allocation5], 1
    %s987 = scalar_lea.sflag [#allocation5], 1
    %988 = vsyncpa %s987, 1

</llo_original>
